<compile_context>
chip_gen: v6e
topology: v6e:2x2x1
jax: 0.10.0
libtpu: 0.0.40
codegen_flags: <defaults>
</compile_context>

<pallas_src>
import functools

import jax
import jax.numpy as jnp
from jax import lax
from jax.experimental import pallas as pl
from jax.experimental.pallas import tpu as pltpu


def _round_up(x: int, m: int) -> int:
    return (x + m - 1) // m * m


def _ffn_kernel(x_ref, w1_ref, b1_ref, w2_ref, b2_ref, o_ref, acc_ref, *, tk, num_k):
    """Fused FFN for one (tm, H) row tile, I chunked in tk-wide pieces."""
    # Explicit cast guarantees the bf16 MXU path even for mixed-dtype callers.
    x = x_ref[...].astype(w1_ref.dtype)                     # (tm, H)

    acc_ref[...] = jnp.zeros_like(acc_ref)                  # (tm, H) f32

    def chunk(k, carry):
        off = pl.multiple_of(k * tk, 128)
        # First projection chunk: (tm, H) @ (H, tk) -> f32 on the MXU.
        h = jnp.dot(x, w1_ref[:, pl.ds(off, tk)],
                    preferred_element_type=jnp.float32)
        h = h + b1_ref[:, pl.ds(off, tk)]                   # f32 bias
        # QuickGELU in f32 (VPU + EUP elementwise; no bf16 elementwise on v5e).
        g = h * jax.nn.sigmoid(1.702 * h)
        # Second projection chunk: (tm, tk) @ (tk, H), accumulate in f32.
        acc_ref[...] += jnp.dot(g.astype(w2_ref.dtype),
                                w2_ref[pl.ds(off, tk), :],
                                preferred_element_type=jnp.float32)
        return carry

    lax.fori_loop(0, num_k, chunk, 0, unroll=(num_k <= 8))

    o_ref[...] = (acc_ref[...] + b2_ref[...]).astype(o_ref.dtype)


@functools.partial(jax.jit, static_argnames=("tm", "tk", "matmul_dtype"))
def vit_feedforward(x, w1, b1, w2, b2, *, tm=512, tk=512, matmul_dtype="bfloat16"):
    """x: (B, S, H); w1: (H, I); b1: (I,); w2: (I, H); b2: (H,). Returns (B, S, H)."""
    B, S, H = x.shape
    I = w1.shape[1]
    M = B * S
    out_dtype = x.dtype

    # Compute (matmul-operand) dtype: bf16 by default for the native MXU rate.
    cd = jnp.dtype(matmul_dtype) if matmul_dtype is not None else jnp.dtype(x.dtype)
    cd_bytes = cd.itemsize
    out_bytes_per = jnp.dtype(out_dtype).itemsize

    x2d = x.reshape(M, H).astype(cd)
    w1c = w1.astype(cd)
    w2c = w2.astype(cd)

    # ---- Row tile tm: sublane-aligned, shrunk for small M, even grid pref. ----
    align = {4: 8, 2: 16, 1: 32}.get(cd_bytes, 8)
    tm = max(align, min(_round_up(tm, align), _round_up(M, align)))
    nsteps = pl.cdiv(M, tm)
    if nsteps % 2 == 1:
        # v7x has 2 TensorCores sharding the parallel row axis; prefer an even
        # (>=2) step count when it does not blow up padding.
        tm_even = _round_up(pl.cdiv(M, nsteps + 1), align)
        if 0 < tm_even < tm:
            tm = tm_even
            nsteps = pl.cdiv(M, tm)
    M_pad = nsteps * tm
    if M_pad != M:
        x2d = jnp.pad(x2d, ((0, M_pad - M), (0, 0)))

    # ---- Intermediate-dim chunking: tk columns of W1 / rows of W2 at a time. ----
    tk = max(128, min(_round_up(tk, 128), _round_up(I, 128)))
    I_pad = _round_up(I, tk)
    num_k = I_pad // tk
    if I_pad != I:
        w1c = jnp.pad(w1c, ((0, 0), (0, I_pad - I)))
        w2c = jnp.pad(w2c, ((0, I_pad - I), (0, 0)))
        b1 = jnp.pad(b1, (0, I_pad - I))

    # Biases as (1, D) f32 rows: broadcast cleanly, elementwise math stays f32.
    b1_2d = b1.reshape(1, I_pad).astype(jnp.float32)
    b2_2d = b2.reshape(1, H).astype(jnp.float32)

    # ---- VMEM budget, clamped to physical VMEM of the actual chip. ----
    w_bytes = (w1c.size + w2c.size) * cd_bytes + (b1_2d.size + b2_2d.size) * 4
    io_bytes = 2 * tm * H * cd_bytes + 2 * tm * H * out_bytes_per  # dbl-buffered x/out
    acc_bytes = tm * H * 4                                         # f32 accumulator
    chunk_bytes = tm * tk * 12                                     # h/g f32 + g bf16
    needed = w_bytes + io_bytes + acc_bytes + chunk_bytes
    try:
        phys_vmem = pltpu.get_tpu_info().vmem_capacity_bytes
    except Exception:  # pragma: no cover - conservative fallback (v7x size)
        phys_vmem = 64 * 1024 * 1024
    vmem_limit = min(int(1.25 * needed) + (4 << 20), phys_vmem - (4 << 20))
    vmem_limit = max(vmem_limit, 16 << 20)

    cost = pl.CostEstimate(
        flops=4 * M_pad * H * I_pad,               # two matmuls
        transcendentals=M_pad * I_pad,             # sigmoid
        bytes_accessed=(x2d.size * cd_bytes + w_bytes + M_pad * H * out_bytes_per),
    )

    kernel = functools.partial(_ffn_kernel, tk=tk, num_k=num_k)

    out2d = pl.pallas_call(
        kernel,
        out_shape=jax.ShapeDtypeStruct((M_pad, H), out_dtype),
        grid=(M_pad // tm,),
        in_specs=[
            pl.BlockSpec((tm, H), lambda i: (i, 0)),              # x tile (pipelined)
            pl.BlockSpec(memory_space=pltpu.MemorySpace.VMEM),    # W1 resident
            pl.BlockSpec(memory_space=pltpu.MemorySpace.VMEM),    # b1 resident
            pl.BlockSpec(memory_space=pltpu.MemorySpace.VMEM),    # W2 resident
            pl.BlockSpec(memory_space=pltpu.MemorySpace.VMEM),    # b2 resident
        ],
        out_specs=pl.BlockSpec((tm, H), lambda i: (i, 0)),
        scratch_shapes=[pltpu.VMEM((tm, H), jnp.float32)],        # f32 accumulator
        compiler_params=pltpu.CompilerParams(
            dimension_semantics=("parallel",),
            vmem_limit_bytes=vmem_limit),
        cost_estimate=cost,
    )(x2d, w1c, b1_2d, w2c, b2_2d)

    return out2d[:M].reshape(B, S, H)


def _reference(x, w1, b1, w2, b2):
    h = jnp.einsum("bsh,hi->bsi", x, w1) + b1
    h = h * jax.nn.sigmoid(1.702 * h)
    return jnp.einsum("bsi,ih->bsh", h, w2) + b2


if __name__ == "__main__":
    # Small config: hidden_size=32, intermediate_size=4*hidden=128, batch=2, seq=8.
    B, S, H = 2, 8, 32
    I = 4 * H

    key = jax.random.PRNGKey(0)
    kx, kw1, kb1, kw2, kb2 = jax.random.split(key, 5)

    x = jax.random.normal(kx, (B, S, H), dtype=jnp.float32)
    # Deterministic parameter init (Linear weight stored as (in, out)).
    w1 = jax.random.normal(kw1, (H, I), dtype=jnp.float32) * (1.0 / H ** 0.5)
    b1 = jax.random.normal(kb1, (I,), dtype=jnp.float32) * 0.01
    w2 = jax.random.normal(kw2, (I, H), dtype=jnp.float32) * (1.0 / I ** 0.5)
    b2 = jax.random.normal(kb2, (H,), dtype=jnp.float32) * 0.01

    ref = _reference(x, w1, b1, w2, b2)

    # Fast path: bf16 matmul operands, f32 accumulation / elementwise math.
    out_bf16 = jax.block_until_ready(vit_feedforward(x, w1, b1, w2, b2))
    assert out_bf16.shape == (B, S, H)
    assert out_bf16.dtype == x.dtype
    assert jnp.allclose(out_bf16, ref, atol=5e-2, rtol=5e-2), "bf16 path mismatch"

    # Exact path: full f32 matmuls, matches the torch module numerics tightly.
    out_f32 = jax.block_until_ready(
        vit_feedforward(x, w1, b1, w2, b2, matmul_dtype=None))
    assert jnp.allclose(out_f32, ref, atol=1e-4, rtol=1e-4), "f32 path mismatch"

    print("KERNEL_OK")
</pallas_src>

<mosaic_0001>
module attributes {stable_mosaic.version = 11 : i64} {
  func.func @_ffn_kernel(%arg0: i32, %arg1: memref<16x32xbf16, #tpu.memory_space<vmem>>, %arg2: memref<32x128xbf16, #tpu.memory_space<vmem>>, %arg3: memref<1x128xf32, #tpu.memory_space<vmem>>, %arg4: memref<128x32xbf16, #tpu.memory_space<vmem>>, %arg5: memref<1x32xf32, #tpu.memory_space<vmem>>, %arg6: memref<16x32xf32, #tpu.memory_space<vmem>>, %arg7: memref<16x32xf32, #tpu.memory_space<vmem>>) attributes {dimension_semantics = [#tpu.dimension_semantics<parallel>], iteration_bounds = array<i64: 1>, scalar_prefetch = 0 : i64, scratch_operands = 1 : i64, tpu.core_type = #tpu.core_type<tc>, window_params = [{transform_indices = @transform_0, window_bounds = array<i64: 16, 32>}, {pipeline_mode = #tpu.pipeline_mode<synchronous>, transform_indices = @transform_1, window_bounds = array<i64: 32, 128>}, {pipeline_mode = #tpu.pipeline_mode<synchronous>, transform_indices = @transform_2, window_bounds = array<i64: 1, 128>}, {pipeline_mode = #tpu.pipeline_mode<synchronous>, transform_indices = @transform_3, window_bounds = array<i64: 128, 32>}, {pipeline_mode = #tpu.pipeline_mode<synchronous>, transform_indices = @transform_4, window_bounds = array<i64: 1, 32>}, {transform_indices = @transform_5, window_bounds = array<i64: 16, 32>}]} {
    %c0 = arith.constant 0 : index
    %c0_0 = arith.constant 0 : index
    %0 = vector.load %arg1[%c0, %c0_0] : memref<16x32xbf16, #tpu.memory_space<vmem>>, vector<16x32xbf16>
    %cst = arith.constant 0.000000e+00 : f32
    %1 = vector.broadcast %cst : f32 to vector<16x32xf32>
    %c0_1 = arith.constant 0 : index
    %c0_2 = arith.constant 0 : index
    %2 = vector.load %arg7[%c0_1, %c0_2] : memref<16x32xf32, #tpu.memory_space<vmem>>, vector<16x32xf32>
    tpu.vector_store %arg7[%c0_1, %c0_2], %1 {strides = array<i32>} : memref<16x32xf32, #tpu.memory_space<vmem>>, vector<16x32xf32>,
    %c0_i32 = arith.constant 0 : i32
    %c128_i32 = arith.constant 128 : i32
    %3 = arith.muli %c0_i32, %c128_i32 : i32
    %4 = tpu.assume_multiple %3, 128 : i32
    %c0_3 = arith.constant 0 : index
    %5 = arith.index_cast %4 : i32 to index
    %6 = vector.load %arg2[%c0_3, %5] : memref<32x128xbf16, #tpu.memory_space<vmem>>, vector<32x128xbf16>
    %cst_4 = arith.constant dense<0.000000e+00> : vector<16x128xf32>
    %7 = tpu.matmul %0, %6, %cst_4 {dimension_numbers = #tpu.dot_dimension_numbers<[1], [0], [0], [1], [0, 0, 1, 1], [], []>} : vector<16x32xbf16>, vector<32x128xbf16>, vector<16x128xf32> -> vector<16x128xf32>
    %c0_5 = arith.constant 0 : index
    %8 = arith.index_cast %4 : i32 to index
    %9 = vector.load %arg3[%c0_5, %8] : memref<1x128xf32, #tpu.memory_space<vmem>>, vector<1x128xf32>
    %10 = vector.broadcast %9 : vector<1x128xf32> to vector<16x128xf32>
    %11 = arith.addf %7, %10 : vector<16x128xf32>
    %cst_6 = arith.constant 1.702000e+00 : f32
    %12 = vector.broadcast %cst_6 : f32 to vector<16x128xf32>
    %13 = arith.mulf %12, %11 : vector<16x128xf32>
    %14 = arith.negf %13 : vector<16x128xf32>
    %15 = math.exp %14 : vector<16x128xf32>
    %cst_7 = arith.constant 1.000000e+00 : f32
    %16 = vector.broadcast %cst_7 : f32 to vector<16x128xf32>
    %17 = arith.addf %16, %15 : vector<16x128xf32>
    %18 = arith.divf %16, %17 : vector<16x128xf32>
    %19 = arith.mulf %11, %18 : vector<16x128xf32>
    %c0_8 = arith.constant 0 : index
    %c0_9 = arith.constant 0 : index
    %20 = vector.load %arg7[%c0_8, %c0_9] : memref<16x32xf32, #tpu.memory_space<vmem>>, vector<16x32xf32>
    %21 = arith.truncf %19 : vector<16x128xf32> to vector<16x128xbf16>
    %22 = arith.index_cast %4 : i32 to index
    %c0_10 = arith.constant 0 : index
    %23 = vector.load %arg4[%22, %c0_10] : memref<128x32xbf16, #tpu.memory_space<vmem>>, vector<128x32xbf16>
    %cst_11 = arith.constant dense<0.000000e+00> : vector<16x32xf32>
    %24 = tpu.matmul %21, %23, %cst_11 {dimension_numbers = #tpu.dot_dimension_numbers<[1], [0], [0], [1], [0, 0, 1, 1], [], []>} : vector<16x128xbf16>, vector<128x32xbf16>, vector<16x32xf32> -> vector<16x32xf32>
    %25 = arith.addf %20, %24 : vector<16x32xf32>
    %c0_12 = arith.constant 0 : index
    %c0_13 = arith.constant 0 : index
    %26 = vector.load %arg7[%c0_12, %c0_13] : memref<16x32xf32, #tpu.memory_space<vmem>>, vector<16x32xf32>
    tpu.vector_store %arg7[%c0_12, %c0_13], %25 {strides = array<i32>} : memref<16x32xf32, #tpu.memory_space<vmem>>, vector<16x32xf32>,
    %c1_i32 = arith.constant 1 : i32
    %c0_14 = arith.constant 0 : index
    %c0_15 = arith.constant 0 : index
    %27 = vector.load %arg7[%c0_14, %c0_15] : memref<16x32xf32, #tpu.memory_space<vmem>>, vector<16x32xf32>
    %c0_16 = arith.constant 0 : index
    %c0_17 = arith.constant 0 : index
    %28 = vector.load %arg5[%c0_16, %c0_17] : memref<1x32xf32, #tpu.memory_space<vmem>>, vector<1x32xf32>
    %29 = vector.broadcast %28 : vector<1x32xf32> to vector<16x32xf32>
    %30 = arith.addf %27, %29 : vector<16x32xf32>
    %c0_18 = arith.constant 0 : index
    %c0_19 = arith.constant 0 : index
    %31 = vector.load %arg6[%c0_18, %c0_19] : memref<16x32xf32, #tpu.memory_space<vmem>>, vector<16x32xf32>
    tpu.vector_store %arg6[%c0_18, %c0_19], %30 {strides = array<i32>} : memref<16x32xf32, #tpu.memory_space<vmem>>, vector<16x32xf32>,
    return
  }
  func.func @transform_0(%arg0: i32) -> (i32, i32) {
    %c0_i32 = arith.constant 0 : i32
    %c0_i32_0 = arith.constant 0 : i32
    return %arg0, %c0_i32 : i32, i32
  }
  func.func @transform_1(%arg0: i32) -> (i32, i32) {
    %c0_i32 = arith.constant 0 : i32
    %c0_i32_0 = arith.constant 0 : i32
    %c0_i32_1 = arith.constant 0 : i32
    return %c0_i32, %c0_i32_0 : i32, i32
  }
  func.func @transform_2(%arg0: i32) -> (i32, i32) {
    %c0_i32 = arith.constant 0 : i32
    %c0_i32_0 = arith.constant 0 : i32
    %c0_i32_1 = arith.constant 0 : i32
    return %c0_i32, %c0_i32_0 : i32, i32
  }
  func.func @transform_3(%arg0: i32) -> (i32, i32) {
    %c0_i32 = arith.constant 0 : i32
    %c0_i32_0 = arith.constant 0 : i32
    %c0_i32_1 = arith.constant 0 : i32
    return %c0_i32, %c0_i32_0 : i32, i32
  }
  func.func @transform_4(%arg0: i32) -> (i32, i32) {
    %c0_i32 = arith.constant 0 : i32
    %c0_i32_0 = arith.constant 0 : i32
    %c0_i32_1 = arith.constant 0 : i32
    return %c0_i32, %c0_i32_0 : i32, i32
  }
  func.func @transform_5(%arg0: i32) -> (i32, i32) {
    %c0_i32 = arith.constant 0 : i32
    %c0_i32_0 = arith.constant 0 : i32
    return %arg0, %c0_i32 : i32, i32
  }
}

</mosaic_0001>

<llo_original>
// kernel: vit_feedforward.1
$region0: #{vit_feedforward.1}
  #allocation0 [shape = 'u32[]', space=smem, size = 0x4, offset = 0x4, fixed_abs, tag = 'smem constant byte address 0x4 - core index']
  #allocation1 [shape = 'u32[144,128]{1,0:T(1,128)}', space=vmem, size = 0x12000, scoped, tag = 'internal scratch']
  #allocation2 [shape = 'f32[16,32]{1,0:T(8,128)}', space=vmem, size = 0x2000, scoped, tag = 'scratch operand']
  %s0 = inlined_call_operand.vmem [shape: bf16[16,32], index: 0, kind: input, shape index: {}]
  %s1 = inlined_call_operand.vmem [shape: bf16[32,128], index: 1, kind: input, shape index: {}]
  %s2 = inlined_call_operand.vmem [shape: f32[1,128], index: 2, kind: input, shape index: {}]
  %s3 = inlined_call_operand.vmem [shape: bf16[128,32], index: 3, kind: input, shape index: {}]
  %s4 = inlined_call_operand.vmem [shape: f32[1,32], index: 4, kind: input, shape index: {}]
  %s5 = inlined_call_operand.hbm [shape: f32[16,32], index: 5, kind: output, shape index: {}]
  %s6 = sld [smem:[#allocation0]]
  $region30: #{vit_feedforward.1} parent=0
    _
  %s8 = ssub.s32 1, %s6
  %s9 = scalar_select 0, %s8, %s6
  $region1: #{vit_feedforward.1} parent=0
    #allocation3 [shape = 'u8[8192]{0}', space=vmem, size = 0x2000, scoped, tag = 'output window, operand 0, single buffered']
    #allocation4 [shape = 's32[1]{0}', space=sflag, size = 0x4, scoped, tag = 'scoped memory for vit_feedforward.1']
    %10 = vsyncpa [#allocation4], 0
    // Predicated region
    $region2: #{vit_feedforward.1} parent=1 // pred_check
      _
    $region3: #{vit_feedforward.1} parent=1 // pred_check_branch
      %12 = sbr.rel (0) target = $region5
    $region4: #{vit_feedforward.1} parent=1 // pred_region
      _
    $region5: #{vit_feedforward.1} parent=1 // pred_fallthru
      _
    // Predicated region
    $region6: #{vit_feedforward.1} parent=1 // pred_check
      _
    $region7: #{vit_feedforward.1} parent=1 // pred_check_branch
      %14 = sbr.rel (0) target = $region9
    $region8: #{vit_feedforward.1} parent=1 // pred_region
      _
    $region9: #{vit_feedforward.1} parent=1 // pred_fallthru
      _
    // Predicated region
    $region10: #{vit_feedforward.1} parent=1 // pred_check
      _
    $region11: #{vit_feedforward.1} parent=1 // pred_check_branch
      %16 = sbr.rel (0) target = $region13
    $region12: #{vit_feedforward.1} parent=1 // pred_region
      _
    $region13: #{vit_feedforward.1} parent=1 // pred_fallthru
      _
    // Predicated region
    $region14: #{vit_feedforward.1} parent=1 // pred_check
      _
    $region15: #{vit_feedforward.1} parent=1 // pred_check_branch
      %18 = sbr.rel (0) target = $region17
    $region16: #{vit_feedforward.1} parent=1 // pred_region
      _
    $region17: #{vit_feedforward.1} parent=1 // pred_fallthru
      _
    // Predicated region
    $region18: #{vit_feedforward.1} parent=1 // pred_check
      _
    $region19: #{vit_feedforward.1} parent=1 // pred_check_branch
      %20 = sbr.rel (0) target = $region21
    $region20: #{vit_feedforward.1} parent=1 // pred_region
      _
    $region21: #{vit_feedforward.1} parent=1 // pred_fallthru
      _
    %v22 = vld [vmem:[%s0] sm:$0xf]
    %v23 = vld [vmem:[%s0 + $0x4] sm:$0xf]
    %vm24 = vcmask 261120
    %25 = vst.msk [vmem:[#allocation2] sm:$0xff] %vm24, 0.0
    %26 = vst.msk [vmem:[#allocation2 + $0x8] sm:$0xff] %vm24, 0.0
    %v27 = vld [vmem:[%s1] sm:$0xf]
    %v28 = vld [vmem:[%s1 + $0x4] sm:$0xf]
    %v29 = vld [vmem:[%s1 + $0x8] sm:$0xf]
    %v30 = vld [vmem:[%s1 + $0xc] sm:$0xf]
    %v31 = vld [vmem:[%s2] sm:$0x1]
    %v33 = vlaneseq
    %v34 = vshrl.u32 %v33, 7
    %v35 = vsub.s32 0, %v34
    %v36 = vrot.slane %v31, %v35
    %v40 = vunpack.c.l.b16 %v22
    %v41 = vunpack.c.l.b16 %v23
    %v42 = vpack.c.b16 %v41, %v40
    %v47 = vunpack.c.l.b16 %v27
    %v48 = vunpack.c.l.b16 %v28
    %v49 = vunpack.c.l.b16 %v29
    %v50 = vunpack.c.l.b16 %v30
    %v51 = vpack.c.b16 %v48, %v47
    %v52 = vpack.c.b16 %v50, %v49
    %v56 = vsel %vm24, %v42, 0
    %58 = vmatprep.subr.bf16.mxu0 0
    %59 = vmatpush1.bf16.msra.mxu0 0
    %60 = vmatprep.subr.bf16.mxu0 0
    %61 = vmatpush1.bf16.msra.mxu0 0
    %62 = vmatprep.subr.bf16.mxu0 0
    %63 = vmatpush1.bf16.msra.mxu0 0
    %64 = vmatprep.subr.bf16.mxu0 0
    %65 = vmatpush1.bf16.msra.mxu0 0
    %66 = vmatprep.subr.bf16.mxu0 0
    %67 = vmatpush1.bf16.msra.mxu0 0
    %68 = vmatprep.subr.bf16.mxu0 0
    %69 = vmatpush1.bf16.msra.mxu0 0
    %70 = vmatprep.subr.bf16.mxu0 0
    %71 = vmatpush1.bf16.msra.mxu0 %v52
    %72 = vmatprep.subr.bf16.mxu0 0
    %73 = vmatpush1.bf16.msra.mxu0 %v51
    %74 = vmatprep.subr.bf16.mxu0 0
    %75 = vmatpush2.bf16.msra.mxu0 0
    %76 = vmatprep.subr.bf16.mxu0 0
    %77 = vmatpush2.bf16.msra.mxu0 0
    %78 = vmatprep.subr.bf16.mxu0 0
    %79 = vmatpush2.bf16.msra.mxu0 0
    %80 = vmatprep.subr.bf16.mxu0 0
    %81 = vmatpush2.bf16.msra.mxu0 0
    %82 = vmatprep.subr.bf16.mxu0 0
    %83 = vmatpush2.bf16.msra.mxu0 0
    %84 = vmatprep.subr.bf16.mxu0 0
    %85 = vmatpush2.bf16.msra.mxu0 0
    %86 = vmatprep.subr.bf16.mxu0 0
    %87 = vmatpush2.bf16.msra.mxu0 0
    %88 = vmatprep.subr.bf16.mxu0 0
    %89 = vmatpush2.bf16.msra.mxu0 0
    %90 = vmatprep.mubr.bf16.mxu0 0
    %91 = vmatmul.mubr.bf16.gmra.mxu0 %v56
    %v92 = vpop.f32.mrf.mxu0
    %v93 = vadd.f32 %v36, %v92
    %v94 = vpop.f32.mrf.mxu0
    %v95 = vpop.f32.mrf.mxu0
    %v96 = vadd.f32 %v36, %v95
    %v97 = vpop.f32.mrf.mxu0
    %98 = vdwg.mxu0
    %v99 = vmul.f32 %v93, 1.702
    %v100 = vmul.f32 %v96, 1.702
    %v101 = vxor.u32 %v99, 2147483648
    %v102 = vxor.u32 %v100, 2147483648
    %v103 = vmul.f32 %v101, 1.442695
    %v104 = vpow.pop %v103
    %v105 = vmul.f32 %v102, 1.442695
    %v106 = vpow.pop %v105
    %v107 = vadd.f32 %v104, 1.0
    %v108 = vadd.f32 %v106, 1.0
    %v109 = vrcp.pop %v107
    %v110 = vmul.f32 1.0, %v109
    %v111 = vrcp.pop %v108
    %v112 = vmul.f32 1.0, %v111
    %v113 = vmul.f32 %v93, %v110
    %v114 = vmul.f32 %v96, %v112
    %v115 = vld [vmem:[#allocation2] sm:$0xff]
    %v116 = vld [vmem:[#allocation2 + $0x8] sm:$0xff]
    %v117 = vpack.c.bf16 %v114, %v113
    %v118 = vld [vmem:[%s3] sm:$0xf]
    %v119 = vld [vmem:[%s3 + $0x4] sm:$0xf]
    %v120 = vld [vmem:[%s3 + $0x8] sm:$0xf]
    %v121 = vld [vmem:[%s3 + $0xc] sm:$0xf]
    %v122 = vld [vmem:[%s3 + $0x10] sm:$0xf]
    %v123 = vld [vmem:[%s3 + $0x14] sm:$0xf]
    %v124 = vld [vmem:[%s3 + $0x18] sm:$0xf]
    %v125 = vld [vmem:[%s3 + $0x1c] sm:$0xf]
    %v126 = vld [vmem:[%s3 + $0x20] sm:$0xf]
    %v127 = vld [vmem:[%s3 + $0x24] sm:$0xf]
    %v128 = vld [vmem:[%s3 + $0x28] sm:$0xf]
    %v129 = vld [vmem:[%s3 + $0x2c] sm:$0xf]
    %v130 = vld [vmem:[%s3 + $0x30] sm:$0xf]
    %v131 = vld [vmem:[%s3 + $0x34] sm:$0xf]
    %v132 = vld [vmem:[%s3 + $0x38] sm:$0xf]
    %v133 = vld [vmem:[%s3 + $0x3c] sm:$0xf]
    %v150 = vunpack.c.l.b16 %v118
    %v151 = vunpack.c.l.b16 %v119
    %v152 = vunpack.c.l.b16 %v120
    %v153 = vunpack.c.l.b16 %v121
    %v154 = vunpack.c.l.b16 %v122
    %v155 = vunpack.c.l.b16 %v123
    %v156 = vunpack.c.l.b16 %v124
    %v157 = vunpack.c.l.b16 %v125
    %v158 = vunpack.c.l.b16 %v126
    %v159 = vunpack.c.l.b16 %v127
    %v160 = vunpack.c.l.b16 %v128
    %v161 = vunpack.c.l.b16 %v129
    %v162 = vunpack.c.l.b16 %v130
    %v163 = vunpack.c.l.b16 %v131
    %v164 = vunpack.c.l.b16 %v132
    %v165 = vunpack.c.l.b16 %v133
    %v166 = vpack.c.b16 %v151, %v150
    %v167 = vpack.c.b16 %v153, %v152
    %v168 = vpack.c.b16 %v155, %v154
    %v169 = vpack.c.b16 %v157, %v156
    %v170 = vpack.c.b16 %v159, %v158
    %v171 = vpack.c.b16 %v161, %v160
    %v172 = vpack.c.b16 %v163, %v162
    %v173 = vpack.c.b16 %v165, %v164
    %182 = vmatprep.subr.bf16.mxu0 0
    %183 = vmatpush1.bf16.msra.mxu0 %v173
    %184 = vmatprep.subr.bf16.mxu0 0
    %185 = vmatpush1.bf16.msra.mxu0 %v172
    %186 = vmatprep.subr.bf16.mxu0 0
    %187 = vmatpush1.bf16.msra.mxu0 %v171
    %188 = vmatprep.subr.bf16.mxu0 0
    %189 = vmatpush1.bf16.msra.mxu0 %v170
    %190 = vmatprep.subr.bf16.mxu0 0
    %191 = vmatpush1.bf16.msra.mxu0 %v169
    %192 = vmatprep.subr.bf16.mxu0 0
    %193 = vmatpush1.bf16.msra.mxu0 %v168
    %194 = vmatprep.subr.bf16.mxu0 0
    %195 = vmatpush1.bf16.msra.mxu0 %v167
    %196 = vmatprep.subr.bf16.mxu0 0
    %197 = vmatpush1.bf16.msra.mxu0 %v166
    %198 = vmatprep.subr.bf16.mxu0 0
    %199 = vmatpush2.bf16.msra.mxu0 0
    %200 = vmatprep.subr.bf16.mxu0 0
    %201 = vmatpush2.bf16.msra.mxu0 0
    %202 = vmatprep.subr.bf16.mxu0 0
    %203 = vmatpush2.bf16.msra.mxu0 0
    %204 = vmatprep.subr.bf16.mxu0 0
    %205 = vmatpush2.bf16.msra.mxu0 0
    %206 = vmatprep.subr.bf16.mxu0 0
    %207 = vmatpush2.bf16.msra.mxu0 0
    %208 = vmatprep.subr.bf16.mxu0 0
    %209 = vmatpush2.bf16.msra.mxu0 0
    %210 = vmatprep.subr.bf16.mxu0 0
    %211 = vmatpush2.bf16.msra.mxu0 0
    %212 = vmatprep.subr.bf16.mxu0 0
    %213 = vmatpush2.bf16.msra.mxu0 0
    %214 = vmatprep.mubr.bf16.mxu0 0
    %215 = vmatmul.mubr.bf16.gmra.mxu0 %v117
    %v216 = vpop.f32.mrf.mxu0
    %v217 = vadd.f32 0.0, %v216
    %v218 = vpop.f32.mrf.mxu0
    %v219 = vpop.f32.mrf.mxu0
    %v220 = vadd.f32 0.0, %v219
    %v221 = vpop.f32.mrf.mxu0
    %222 = vdwg.mxu0
    %v223 = vadd.f32 %v115, %v217
    %v224 = vadd.f32 %v116, %v220
    %225 = vst.msk [vmem:[#allocation2] sm:$0xff] %vm24, %v223
    %226 = vst.msk [vmem:[#allocation2 + $0x8] sm:$0xff] %vm24, %v224
    %v227 = vld [vmem:[#allocation2] sm:$0xff]
    %v228 = vld [vmem:[#allocation2 + $0x8] sm:$0xff]
    %v229 = vld [vmem:[%s4] sm:$0x1]
    %v231 = vlaneseq
    %v232 = vshrl.u32 %v231, 7
    %v233 = vsub.s32 0, %v232
    %v234 = vrot.slane %v229, %v233
    %v236 = vadd.f32 %v227, %v234
    %v237 = vadd.f32 %v228, %v234
    %238 = vst.msk [vmem:[#allocation3] sm:$0xff] %vm24, %v236
    %239 = vst.msk [vmem:[#allocation3 + $0x8] sm:$0xff] %vm24, %v237
    // Predicated region
    $region22: #{vit_feedforward.1} parent=1 // pred_check
      _
    $region23: #{vit_feedforward.1} parent=1 // pred_check_branch
      %241 = sbr.rel (0) target = $region25
    $region24: #{vit_feedforward.1} parent=1 // pred_region
      %s243 = ssub.s32 256, 256
      %244 = vsyncadd [#allocation4], %s243
      %s245 = sshll.u32 [#allocation3], 4
      %s246 = int_to_ptr.vmem [resolvable:$true] %s245
      %251 = dma.vmem_to_hbm [thread:$0]  %s246, 256, %s5, [#allocation4], 128, 128, 8
    $region25: #{vit_feedforward.1} parent=1 // pred_fallthru
      _
    // Predicated region
    $region26: #{vit_feedforward.1} parent=1 // pred_check
      _
    $region27: #{vit_feedforward.1} parent=1 // pred_check_branch
      %253 = sbr.rel (0) target = $region29
    $region28: #{vit_feedforward.1} parent=1 // pred_region
      %254 = dma.done [#allocation4], 256
    $region29: #{vit_feedforward.1} parent=1 // pred_fallthru
      _
    %255 = vsyncpa [#allocation4], 1

</llo_original>
